<compile_context>
chip_gen: v7x
topology: tpu7x:2x2x1
jax: 0.10.0
libtpu: 0.0.40
codegen_flags: <defaults>
</compile_context>

<pallas_src>
import numpy as np
import jax
import jax.numpy as jnp
from jax import lax
from jax.experimental import pallas as pl
from jax.experimental.pallas import tpu as pltpu


# ---------------------------------------------------------------------------
# Index matrix (tiny host-side constant, mirrors _update_index_matrix)
# ---------------------------------------------------------------------------
def _build_index_matrix(batch_size: int, linear: bool) -> np.ndarray:
    b = batch_size
    m = np.zeros((2 * b, 2 * b), dtype=np.float32)
    if linear:
        for i in range(b):
            s1, s2 = i, (i + 1) % b
            t1, t2 = s1 + b, s2 + b
            m[s1, s2] = 1.0 / b
            m[t1, t2] = 1.0 / b
            m[s1, t2] = -1.0 / b
            m[s2, t1] = -1.0 / b
    else:
        for i in range(b):
            for j in range(b):
                if i != j:
                    m[i, j] = 1.0 / (b * (b - 1))
                    m[i + b, j + b] = 1.0 / (b * (b - 1))
        for i in range(b):
            for j in range(b):
                m[i, j + b] = -1.0 / (b * b)
                m[i + b, j] = -1.0 / (b * b)
    return m


def _sum11(x):
    """Full reduction kept as a (1, 1) array (no rank-0 values in-kernel)."""
    return jnp.sum(jnp.sum(x, axis=1, keepdims=True), axis=0, keepdims=True)


# ---------------------------------------------------------------------------
# Single fused kernel
# ---------------------------------------------------------------------------
def _make_jmmd_kernel(layer_specs, batch_size):
    n_layers = len(layer_specs)
    bias = 2.0 / float(batch_size - 1)
    inv_n2 = 1.0 / float((2 * batch_size) * (2 * batch_size))
    dn = (((1,), (1,)), ((), ()))  # contract the feature dim of both operands

    def kernel(*refs):
        # refs: zs_0, zt_0, ..., zs_{L-1}, zt_{L-1}, idx_ss, idx_tt, idx_cross, out
        idx_ss_ref = refs[2 * n_layers]
        idx_tt_ref = refs[2 * n_layers + 1]
        idx_cr_ref = refs[2 * n_layers + 2]
        out_ref = refs[2 * n_layers + 3]

        km_ss = km_st = km_tt = None
        for l, specs in enumerate(layer_specs):
            zs = refs[2 * l][...]            # (B, D_l), native dtype for the MXU
            zt = refs[2 * l + 1][...]

            # Squared row norms (VPU; co-issues with the MXU matmuls below).
            zs_f = zs.astype(jnp.float32)
            zt_f = zt.astype(jnp.float32)
            ns = jnp.sum(zs_f * zs_f, axis=-1, keepdims=True)   # (B, 1)
            nt = jnp.sum(zt_f * zt_f, axis=-1, keepdims=True)   # (B, 1)
            ns_r = jnp.transpose(ns)                             # (1, B)
            nt_r = jnp.transpose(nt)                             # (1, B)

            # Gram blocks: A @ B^T without materializing any transpose.
            g_ss = lax.dot_general(zs, zs, dn, preferred_element_type=jnp.float32)
            g_st = lax.dot_general(zs, zt, dn, preferred_element_type=jnp.float32)
            g_tt = lax.dot_general(zt, zt, dn, preferred_element_type=jnp.float32)

            # Pairwise squared distances of cat([zs, zt]) as (B, B) blocks.
            d_ss = jnp.maximum(ns + ns_r - 2.0 * g_ss, 0.0)
            d_st = jnp.maximum(ns + nt_r - 2.0 * g_st, 0.0)
            d_tt = jnp.maximum(nt + nt_r - 2.0 * g_tt, 0.0)

            if any(kind == "alpha" for kind, _ in specs):
                total_d = _sum11(d_ss) + _sum11(d_tt) + 2.0 * _sum11(d_st)
                # clamp only guards the degenerate all-identical-features case
                mean_d = jnp.maximum(total_d * inv_n2, 1e-12)    # (1, 1)

            l_ss = l_st = l_tt = None
            for kind, val in specs:
                if kind == "alpha":          # dynamic sigma^2 = alpha * mean(dist)
                    scale = (-0.5 / float(val)) / mean_d         # (1, 1), 1 divide
                else:                        # fixed sigma: sigma^2 = val * val
                    scale = -0.5 / float(val * val)
                k_ss = jnp.exp(d_ss * scale)
                k_st = jnp.exp(d_st * scale)
                k_tt = jnp.exp(d_tt * scale)
                l_ss = k_ss if l_ss is None else l_ss + k_ss
                l_st = k_st if l_st is None else l_st + k_st
                l_tt = k_tt if l_tt is None else l_tt + k_tt

            km_ss = l_ss if km_ss is None else km_ss * l_ss
            km_st = l_st if km_st is None else km_st * l_st
            km_tt = l_tt if km_tt is None else km_tt * l_tt

        # km[B:, :B] == km[:B, B:]^T, so the two cross blocks were folded into
        # the single idx_cr weight on the host.
        total = (_sum11(km_ss * idx_ss_ref[...])
                 + _sum11(km_tt * idx_tt_ref[...])
                 + _sum11(km_st * idx_cr_ref[...]))
        out_ref[...] = total + bias

    return kernel


# ---------------------------------------------------------------------------
# Wrapper mirroring the nn.Module forward
# ---------------------------------------------------------------------------
def jmmd_loss(z_s, z_t, kernels, linear=True):
    """
    z_s, z_t : sequences of (B, D_l) arrays (one per layer).
    kernels  : per-layer sequence of Gaussian-kernel specs:
                 ("alpha", a) -> dynamic sigma^2 = a * mean(pairwise dist)
                 ("sigma", s) -> fixed sigma (sigma^2 = s * s)
    """
    assert len(z_s) == len(z_t) == len(kernels) >= 1
    batch_size = int(z_s[0].shape[0])
    assert batch_size >= 2, "JMMD requires batch_size >= 2 (loss has a 2/(B-1) term)"
    for zs, zt in zip(z_s, z_t):
        assert zs.shape == zt.shape and int(zs.shape[0]) == batch_size

    idx = _build_index_matrix(batch_size, linear)
    b = batch_size
    idx_ss = jnp.asarray(idx[:b, :b])
    idx_tt = jnp.asarray(idx[b:, b:])
    idx_cr = jnp.asarray(idx[:b, b:] + idx[b:, :b].T)   # folds the ts block

    specs = tuple(tuple((str(k), float(v)) for k, v in layer) for layer in kernels)

    inputs = []
    for zs, zt in zip(z_s, z_t):
        inputs.append(zs)
        inputs.append(zt)
    inputs += [idx_ss, idx_tt, idx_cr]

    # Raise scoped VMEM only if the fully-resident inputs need it (rare).
    in_bytes = sum(int(np.prod(x.shape)) * jnp.dtype(x.dtype).itemsize for x in inputs)
    est = 4 * in_bytes + 64 * b * b * 4 + (1 << 20)
    compiler_params = None
    if est > (30 << 20):
        compiler_params = pltpu.CompilerParams(vmem_limit_bytes=int(min(est, 64 << 20)))

    vmem_spec = pl.BlockSpec(memory_space=pltpu.MemorySpace.VMEM)
    out = pl.pallas_call(
        _make_jmmd_kernel(specs, batch_size),
        out_shape=jax.ShapeDtypeStruct((1, 1), jnp.float32),
        in_specs=[vmem_spec] * len(inputs),
        out_specs=vmem_spec,
        compiler_params=compiler_params,
    )(*inputs)
    return out[0, 0]


class JointMultipleKernelMaximumMeanDiscrepancy:
    """Thin stateless wrapper mirroring the PyTorch module API (identity thetas)."""

    def __init__(self, kernels, linear=True):
        self.kernels = kernels
        self.linear = linear

    def __call__(self, z_s, z_t):
        return jmmd_loss(z_s, z_t, self.kernels, self.linear)


# ---------------------------------------------------------------------------
# Pure-JAX reference mirroring the PyTorch code
# ---------------------------------------------------------------------------
def _reference_jmmd(z_s, z_t, kernels, linear=True):
    b = z_s[0].shape[0]
    idx = jnp.asarray(_build_index_matrix(b, linear))
    km = jnp.ones((2 * b, 2 * b), jnp.float32)
    for zs, zt, specs in zip(z_s, z_t, kernels):
        f = jnp.concatenate([zs, zt], axis=0).astype(jnp.float32)
        diff = f[None, :, :] - f[:, None, :]
        d = jnp.sum(diff * diff, axis=2)
        layer_sum = jnp.zeros_like(d)
        for kind, val in specs:
            if kind == "alpha":
                sigma_sq = val * jnp.mean(d)
            else:
                sigma_sq = jnp.float32(val * val)
            layer_sum = layer_sum + jnp.exp(-d / (2.0 * sigma_sq))
        km = km * layer_sum
    return jnp.sum(km * idx) + 2.0 / (b - 1)


if __name__ == "__main__":
    key = jax.random.PRNGKey(0)
    k1, k2, k3, k4 = jax.random.split(key, 4)

    B = 8
    # Layer 0: bottleneck features (B, 32); Layer 1: class probabilities (B, 4).
    zs_feat = jax.random.normal(k1, (B, 32), dtype=jnp.float32)
    zt_feat = jax.random.normal(k2, (B, 32), dtype=jnp.float32) + 0.5
    zs_prob = jax.nn.softmax(jax.random.normal(k3, (B, 4), dtype=jnp.float32), axis=-1)
    zt_prob = jax.nn.softmax(jax.random.normal(k4, (B, 4), dtype=jnp.float32), axis=-1)

    z_s = (zs_feat, zs_prob)
    z_t = (zt_feat, zt_prob)
    # Standard JAN setup: multi-alpha Gaussian kernels on features,
    # fixed-sigma Gaussian kernel on the classifier output.
    kernels = (
        (("alpha", 0.5), ("alpha", 1.0), ("alpha", 2.0)),
        (("sigma", 0.92),),
    )

    jmmd = JointMultipleKernelMaximumMeanDiscrepancy(kernels, linear=True)
    out = jmmd(z_s, z_t)
    out = jax.block_until_ready(out)

    ref = _reference_jmmd(z_s, z_t, kernels, linear=True)
    assert jnp.allclose(out, ref, atol=2e-4, rtol=1e-4), (out, ref)
    print("KERNEL_OK")
</pallas_src>

<mosaic_0001>
module attributes {stable_mosaic.version = 11 : i64} {
  func.func @kernel(%arg0: memref<8x32xf32, #tpu.memory_space<vmem>>, %arg1: memref<8x32xf32, #tpu.memory_space<vmem>>, %arg2: memref<8x4xf32, #tpu.memory_space<vmem>>, %arg3: memref<8x4xf32, #tpu.memory_space<vmem>>, %arg4: memref<8x8xf32, #tpu.memory_space<vmem>>, %arg5: memref<8x8xf32, #tpu.memory_space<vmem>>, %arg6: memref<8x8xf32, #tpu.memory_space<vmem>>, %arg7: memref<1x1xf32, #tpu.memory_space<vmem>>) attributes {dimension_semantics = [], scalar_prefetch = 0 : i64, scratch_operands = 0 : i64, tpu.core_type = #tpu.core_type<tc>} {
    %c0 = arith.constant 0 : index
    %c0_0 = arith.constant 0 : index
    %0 = vector.load %arg0[%c0, %c0_0] : memref<8x32xf32, #tpu.memory_space<vmem>>, vector<8x32xf32>
    %c0_1 = arith.constant 0 : index
    %c0_2 = arith.constant 0 : index
    %1 = vector.load %arg1[%c0_1, %c0_2] : memref<8x32xf32, #tpu.memory_space<vmem>>, vector<8x32xf32>
    %2 = arith.mulf %0, %0 : vector<8x32xf32>
    %cst = arith.constant dense<0.000000e+00> : vector<8xf32>
    %3 = vector.multi_reduction <add>, %2, %cst [1] : vector<8x32xf32> to vector<8xf32>
    %4 = vector.shape_cast %3 : vector<8xf32> to vector<8x1xf32>
    %5 = arith.mulf %1, %1 : vector<8x32xf32>
    %cst_3 = arith.constant dense<0.000000e+00> : vector<8xf32>
    %6 = vector.multi_reduction <add>, %5, %cst_3 [1] : vector<8x32xf32> to vector<8xf32>
    %7 = vector.shape_cast %6 : vector<8xf32> to vector<8x1xf32>
    %8 = tpu.transpose %4, [1, 0] : vector<8x1xf32> -> vector<1x8xf32>
    %9 = tpu.transpose %7, [1, 0] : vector<8x1xf32> -> vector<1x8xf32>
    %cst_4 = arith.constant dense<0.000000e+00> : vector<8x8xf32>
    %10 = tpu.matmul %0, %0, %cst_4 {dimension_numbers = #tpu.dot_dimension_numbers<[1], [1], [0], [0], [0, 0, 1, 0], [], []>} : vector<8x32xf32>, vector<8x32xf32>, vector<8x8xf32> -> vector<8x8xf32>
    %cst_5 = arith.constant dense<0.000000e+00> : vector<8x8xf32>
    %11 = tpu.matmul %0, %1, %cst_5 {dimension_numbers = #tpu.dot_dimension_numbers<[1], [1], [0], [0], [0, 0, 1, 0], [], []>} : vector<8x32xf32>, vector<8x32xf32>, vector<8x8xf32> -> vector<8x8xf32>
    %cst_6 = arith.constant dense<0.000000e+00> : vector<8x8xf32>
    %12 = tpu.matmul %1, %1, %cst_6 {dimension_numbers = #tpu.dot_dimension_numbers<[1], [1], [0], [0], [0, 0, 1, 0], [], []>} : vector<8x32xf32>, vector<8x32xf32>, vector<8x8xf32> -> vector<8x8xf32>
    %13 = vector.broadcast %4 : vector<8x1xf32> to vector<8x8xf32>
    %14 = vector.broadcast %8 : vector<1x8xf32> to vector<8x8xf32>
    %15 = arith.addf %13, %14 : vector<8x8xf32>
    %cst_7 = arith.constant 2.000000e+00 : f32
    %16 = vector.broadcast %cst_7 : f32 to vector<8x8xf32>
    %17 = arith.mulf %16, %10 : vector<8x8xf32>
    %18 = arith.subf %15, %17 : vector<8x8xf32>
    %cst_8 = arith.constant 0.000000e+00 : f32
    %19 = vector.broadcast %cst_8 : f32 to vector<8x8xf32>
    %20 = arith.maximumf %18, %19 : vector<8x8xf32>
    %21 = vector.broadcast %4 : vector<8x1xf32> to vector<8x8xf32>
    %22 = vector.broadcast %9 : vector<1x8xf32> to vector<8x8xf32>
    %23 = arith.addf %21, %22 : vector<8x8xf32>
    %cst_9 = arith.constant 2.000000e+00 : f32
    %24 = vector.broadcast %cst_9 : f32 to vector<8x8xf32>
    %25 = arith.mulf %24, %11 : vector<8x8xf32>
    %26 = arith.subf %23, %25 : vector<8x8xf32>
    %cst_10 = arith.constant 0.000000e+00 : f32
    %27 = vector.broadcast %cst_10 : f32 to vector<8x8xf32>
    %28 = arith.maximumf %26, %27 : vector<8x8xf32>
    %29 = vector.broadcast %7 : vector<8x1xf32> to vector<8x8xf32>
    %30 = vector.broadcast %9 : vector<1x8xf32> to vector<8x8xf32>
    %31 = arith.addf %29, %30 : vector<8x8xf32>
    %cst_11 = arith.constant 2.000000e+00 : f32
    %32 = vector.broadcast %cst_11 : f32 to vector<8x8xf32>
    %33 = arith.mulf %32, %12 : vector<8x8xf32>
    %34 = arith.subf %31, %33 : vector<8x8xf32>
    %cst_12 = arith.constant 0.000000e+00 : f32
    %35 = vector.broadcast %cst_12 : f32 to vector<8x8xf32>
    %36 = arith.maximumf %34, %35 : vector<8x8xf32>
    %cst_13 = arith.constant dense<0.000000e+00> : vector<8xf32>
    %37 = vector.multi_reduction <add>, %20, %cst_13 [1] : vector<8x8xf32> to vector<8xf32>
    %38 = vector.shape_cast %37 : vector<8xf32> to vector<8x1xf32>
    %cst_14 = arith.constant dense<0.000000e+00> : vector<1xf32>
    %39 = vector.multi_reduction <add>, %38, %cst_14 [0] : vector<8x1xf32> to vector<1xf32>
    %40 = vector.shape_cast %39 : vector<1xf32> to vector<1x1xf32>
    %cst_15 = arith.constant dense<0.000000e+00> : vector<8xf32>
    %41 = vector.multi_reduction <add>, %36, %cst_15 [1] : vector<8x8xf32> to vector<8xf32>
    %42 = vector.shape_cast %41 : vector<8xf32> to vector<8x1xf32>
    %cst_16 = arith.constant dense<0.000000e+00> : vector<1xf32>
    %43 = vector.multi_reduction <add>, %42, %cst_16 [0] : vector<8x1xf32> to vector<1xf32>
    %44 = vector.shape_cast %43 : vector<1xf32> to vector<1x1xf32>
    %45 = arith.addf %40, %44 : vector<1x1xf32>
    %cst_17 = arith.constant dense<0.000000e+00> : vector<8xf32>
    %46 = vector.multi_reduction <add>, %28, %cst_17 [1] : vector<8x8xf32> to vector<8xf32>
    %47 = vector.shape_cast %46 : vector<8xf32> to vector<8x1xf32>
    %cst_18 = arith.constant dense<0.000000e+00> : vector<1xf32>
    %48 = vector.multi_reduction <add>, %47, %cst_18 [0] : vector<8x1xf32> to vector<1xf32>
    %49 = vector.shape_cast %48 : vector<1xf32> to vector<1x1xf32>
    %cst_19 = arith.constant 2.000000e+00 : f32
    %50 = vector.broadcast %cst_19 : f32 to vector<1x1xf32>
    %51 = arith.mulf %50, %49 : vector<1x1xf32>
    %52 = arith.addf %45, %51 : vector<1x1xf32>
    %cst_20 = arith.constant 3.906250e-03 : f32
    %53 = vector.broadcast %cst_20 : f32 to vector<1x1xf32>
    %54 = arith.mulf %52, %53 : vector<1x1xf32>
    %cst_21 = arith.constant 9.99999996E-13 : f32
    %55 = vector.broadcast %cst_21 : f32 to vector<1x1xf32>
    %56 = arith.maximumf %54, %55 : vector<1x1xf32>
    %cst_22 = arith.constant -1.000000e+00 : f32
    %57 = vector.broadcast %cst_22 : f32 to vector<1x1xf32>
    %58 = arith.divf %57, %56 : vector<1x1xf32>
    %59 = vector.broadcast %58 : vector<1x1xf32> to vector<8x8xf32>
    %60 = arith.mulf %20, %59 : vector<8x8xf32>
    %61 = math.exp %60 : vector<8x8xf32>
    %62 = vector.broadcast %58 : vector<1x1xf32> to vector<8x8xf32>
    %63 = arith.mulf %28, %62 : vector<8x8xf32>
    %64 = math.exp %63 : vector<8x8xf32>
    %65 = vector.broadcast %58 : vector<1x1xf32> to vector<8x8xf32>
    %66 = arith.mulf %36, %65 : vector<8x8xf32>
    %67 = math.exp %66 : vector<8x8xf32>
    %cst_23 = arith.constant -5.000000e-01 : f32
    %68 = vector.broadcast %cst_23 : f32 to vector<1x1xf32>
    %69 = arith.divf %68, %56 : vector<1x1xf32>
    %70 = vector.broadcast %69 : vector<1x1xf32> to vector<8x8xf32>
    %71 = arith.mulf %20, %70 : vector<8x8xf32>
    %72 = math.exp %71 : vector<8x8xf32>
    %73 = vector.broadcast %69 : vector<1x1xf32> to vector<8x8xf32>
    %74 = arith.mulf %28, %73 : vector<8x8xf32>
    %75 = math.exp %74 : vector<8x8xf32>
    %76 = vector.broadcast %69 : vector<1x1xf32> to vector<8x8xf32>
    %77 = arith.mulf %36, %76 : vector<8x8xf32>
    %78 = math.exp %77 : vector<8x8xf32>
    %79 = arith.addf %61, %72 : vector<8x8xf32>
    %80 = arith.addf %64, %75 : vector<8x8xf32>
    %81 = arith.addf %67, %78 : vector<8x8xf32>
    %cst_24 = arith.constant -2.500000e-01 : f32
    %82 = vector.broadcast %cst_24 : f32 to vector<1x1xf32>
    %83 = arith.divf %82, %56 : vector<1x1xf32>
    %84 = vector.broadcast %83 : vector<1x1xf32> to vector<8x8xf32>
    %85 = arith.mulf %20, %84 : vector<8x8xf32>
    %86 = math.exp %85 : vector<8x8xf32>
    %87 = vector.broadcast %83 : vector<1x1xf32> to vector<8x8xf32>
    %88 = arith.mulf %28, %87 : vector<8x8xf32>
    %89 = math.exp %88 : vector<8x8xf32>
    %90 = vector.broadcast %83 : vector<1x1xf32> to vector<8x8xf32>
    %91 = arith.mulf %36, %90 : vector<8x8xf32>
    %92 = math.exp %91 : vector<8x8xf32>
    %93 = arith.addf %79, %86 : vector<8x8xf32>
    %94 = arith.addf %80, %89 : vector<8x8xf32>
    %95 = arith.addf %81, %92 : vector<8x8xf32>
    %c0_25 = arith.constant 0 : index
    %c0_26 = arith.constant 0 : index
    %96 = vector.load %arg2[%c0_25, %c0_26] : memref<8x4xf32, #tpu.memory_space<vmem>>, vector<8x4xf32>
    %c0_27 = arith.constant 0 : index
    %c0_28 = arith.constant 0 : index
    %97 = vector.load %arg3[%c0_27, %c0_28] : memref<8x4xf32, #tpu.memory_space<vmem>>, vector<8x4xf32>
    %98 = arith.mulf %96, %96 : vector<8x4xf32>
    %cst_29 = arith.constant dense<0.000000e+00> : vector<8xf32>
    %99 = vector.multi_reduction <add>, %98, %cst_29 [1] : vector<8x4xf32> to vector<8xf32>
    %100 = vector.shape_cast %99 : vector<8xf32> to vector<8x1xf32>
    %101 = arith.mulf %97, %97 : vector<8x4xf32>
    %cst_30 = arith.constant dense<0.000000e+00> : vector<8xf32>
    %102 = vector.multi_reduction <add>, %101, %cst_30 [1] : vector<8x4xf32> to vector<8xf32>
    %103 = vector.shape_cast %102 : vector<8xf32> to vector<8x1xf32>
    %104 = tpu.transpose %100, [1, 0] : vector<8x1xf32> -> vector<1x8xf32>
    %105 = tpu.transpose %103, [1, 0] : vector<8x1xf32> -> vector<1x8xf32>
    %cst_31 = arith.constant dense<0.000000e+00> : vector<8x8xf32>
    %106 = tpu.matmul %96, %96, %cst_31 {dimension_numbers = #tpu.dot_dimension_numbers<[1], [1], [0], [0], [0, 0, 1, 0], [], []>} : vector<8x4xf32>, vector<8x4xf32>, vector<8x8xf32> -> vector<8x8xf32>
    %cst_32 = arith.constant dense<0.000000e+00> : vector<8x8xf32>
    %107 = tpu.matmul %96, %97, %cst_32 {dimension_numbers = #tpu.dot_dimension_numbers<[1], [1], [0], [0], [0, 0, 1, 0], [], []>} : vector<8x4xf32>, vector<8x4xf32>, vector<8x8xf32> -> vector<8x8xf32>
    %cst_33 = arith.constant dense<0.000000e+00> : vector<8x8xf32>
    %108 = tpu.matmul %97, %97, %cst_33 {dimension_numbers = #tpu.dot_dimension_numbers<[1], [1], [0], [0], [0, 0, 1, 0], [], []>} : vector<8x4xf32>, vector<8x4xf32>, vector<8x8xf32> -> vector<8x8xf32>
    %109 = vector.broadcast %100 : vector<8x1xf32> to vector<8x8xf32>
    %110 = vector.broadcast %104 : vector<1x8xf32> to vector<8x8xf32>
    %111 = arith.addf %109, %110 : vector<8x8xf32>
    %cst_34 = arith.constant 2.000000e+00 : f32
    %112 = vector.broadcast %cst_34 : f32 to vector<8x8xf32>
    %113 = arith.mulf %112, %106 : vector<8x8xf32>
    %114 = arith.subf %111, %113 : vector<8x8xf32>
    %cst_35 = arith.constant 0.000000e+00 : f32
    %115 = vector.broadcast %cst_35 : f32 to vector<8x8xf32>
    %116 = arith.maximumf %114, %115 : vector<8x8xf32>
    %117 = vector.broadcast %100 : vector<8x1xf32> to vector<8x8xf32>
    %118 = vector.broadcast %105 : vector<1x8xf32> to vector<8x8xf32>
    %119 = arith.addf %117, %118 : vector<8x8xf32>
    %cst_36 = arith.constant 2.000000e+00 : f32
    %120 = vector.broadcast %cst_36 : f32 to vector<8x8xf32>
    %121 = arith.mulf %120, %107 : vector<8x8xf32>
    %122 = arith.subf %119, %121 : vector<8x8xf32>
    %cst_37 = arith.constant 0.000000e+00 : f32
    %123 = vector.broadcast %cst_37 : f32 to vector<8x8xf32>
    %124 = arith.maximumf %122, %123 : vector<8x8xf32>
    %125 = vector.broadcast %103 : vector<8x1xf32> to vector<8x8xf32>
    %126 = vector.broadcast %105 : vector<1x8xf32> to vector<8x8xf32>
    %127 = arith.addf %125, %126 : vector<8x8xf32>
    %cst_38 = arith.constant 2.000000e+00 : f32
    %128 = vector.broadcast %cst_38 : f32 to vector<8x8xf32>
    %129 = arith.mulf %128, %108 : vector<8x8xf32>
    %130 = arith.subf %127, %129 : vector<8x8xf32>
    %cst_39 = arith.constant 0.000000e+00 : f32
    %131 = vector.broadcast %cst_39 : f32 to vector<8x8xf32>
    %132 = arith.maximumf %130, %131 : vector<8x8xf32>
    %cst_40 = arith.constant -0.590737224 : f32
    %133 = vector.broadcast %cst_40 : f32 to vector<8x8xf32>
    %134 = arith.mulf %116, %133 : vector<8x8xf32>
    %135 = math.exp %134 : vector<8x8xf32>
    %cst_41 = arith.constant -0.590737224 : f32
    %136 = vector.broadcast %cst_41 : f32 to vector<8x8xf32>
    %137 = arith.mulf %124, %136 : vector<8x8xf32>
    %138 = math.exp %137 : vector<8x8xf32>
    %cst_42 = arith.constant -0.590737224 : f32
    %139 = vector.broadcast %cst_42 : f32 to vector<8x8xf32>
    %140 = arith.mulf %132, %139 : vector<8x8xf32>
    %141 = math.exp %140 : vector<8x8xf32>
    %142 = arith.mulf %93, %135 : vector<8x8xf32>
    %143 = arith.mulf %94, %138 : vector<8x8xf32>
    %144 = arith.mulf %95, %141 : vector<8x8xf32>
    %c0_43 = arith.constant 0 : index
    %c0_44 = arith.constant 0 : index
    %145 = vector.load %arg4[%c0_43, %c0_44] : memref<8x8xf32, #tpu.memory_space<vmem>>, vector<8x8xf32>
    %146 = arith.mulf %142, %145 : vector<8x8xf32>
    %cst_45 = arith.constant dense<0.000000e+00> : vector<8xf32>
    %147 = vector.multi_reduction <add>, %146, %cst_45 [1] : vector<8x8xf32> to vector<8xf32>
    %148 = vector.shape_cast %147 : vector<8xf32> to vector<8x1xf32>
    %cst_46 = arith.constant dense<0.000000e+00> : vector<1xf32>
    %149 = vector.multi_reduction <add>, %148, %cst_46 [0] : vector<8x1xf32> to vector<1xf32>
    %150 = vector.shape_cast %149 : vector<1xf32> to vector<1x1xf32>
    %c0_47 = arith.constant 0 : index
    %c0_48 = arith.constant 0 : index
    %151 = vector.load %arg5[%c0_47, %c0_48] : memref<8x8xf32, #tpu.memory_space<vmem>>, vector<8x8xf32>
    %152 = arith.mulf %144, %151 : vector<8x8xf32>
    %cst_49 = arith.constant dense<0.000000e+00> : vector<8xf32>
    %153 = vector.multi_reduction <add>, %152, %cst_49 [1] : vector<8x8xf32> to vector<8xf32>
    %154 = vector.shape_cast %153 : vector<8xf32> to vector<8x1xf32>
    %cst_50 = arith.constant dense<0.000000e+00> : vector<1xf32>
    %155 = vector.multi_reduction <add>, %154, %cst_50 [0] : vector<8x1xf32> to vector<1xf32>
    %156 = vector.shape_cast %155 : vector<1xf32> to vector<1x1xf32>
    %157 = arith.addf %150, %156 : vector<1x1xf32>
    %c0_51 = arith.constant 0 : index
    %c0_52 = arith.constant 0 : index
    %158 = vector.load %arg6[%c0_51, %c0_52] : memref<8x8xf32, #tpu.memory_space<vmem>>, vector<8x8xf32>
    %159 = arith.mulf %143, %158 : vector<8x8xf32>
    %cst_53 = arith.constant dense<0.000000e+00> : vector<8xf32>
    %160 = vector.multi_reduction <add>, %159, %cst_53 [1] : vector<8x8xf32> to vector<8xf32>
    %161 = vector.shape_cast %160 : vector<8xf32> to vector<8x1xf32>
    %cst_54 = arith.constant dense<0.000000e+00> : vector<1xf32>
    %162 = vector.multi_reduction <add>, %161, %cst_54 [0] : vector<8x1xf32> to vector<1xf32>
    %163 = vector.shape_cast %162 : vector<1xf32> to vector<1x1xf32>
    %164 = arith.addf %157, %163 : vector<1x1xf32>
    %cst_55 = arith.constant 0.285714298 : f32
    %165 = vector.broadcast %cst_55 : f32 to vector<1x1xf32>
    %166 = arith.addf %164, %165 : vector<1x1xf32>
    %c0_56 = arith.constant 0 : index
    %c0_57 = arith.constant 0 : index
    %167 = vector.load %arg7[%c0_56, %c0_57] : memref<1x1xf32, #tpu.memory_space<vmem>>, vector<1x1xf32>
    tpu.vector_store %arg7[%c0_56, %c0_57], %166 {strides = array<i32>} : memref<1x1xf32, #tpu.memory_space<vmem>>, vector<1x1xf32>,
    return
  }
}

</mosaic_0001>

<llo_original>
// kernel: tpu_custom_call.1
$region0: #{tpu_custom_call.1}
  #allocation0 [shape = 'u32[]', space=smem, size = 0x4, offset = 0x4, fixed_abs, tag = 'smem constant byte address 0x4 - core index']
  #allocation1 [shape = 'u32[144,128]{1,0:T(1,128)}', space=vmem, size = 0x12000, scoped, tag = 'internal scratch']
  %s0 = inlined_call_operand.vmem [shape: f32[8,32], index: 0, kind: input, shape index: {}]
  %s1 = inlined_call_operand.vmem [shape: f32[8,32], index: 1, kind: input, shape index: {}]
  %s2 = inlined_call_operand.vmem [shape: f32[8,4], index: 2, kind: input, shape index: {}]
  %s3 = inlined_call_operand.vmem [shape: f32[8,4], index: 3, kind: input, shape index: {}]
  %s4 = inlined_call_operand.vmem [shape: f32[8,8], index: 4, kind: input, shape index: {}]
  %s5 = inlined_call_operand.vmem [shape: f32[8,8], index: 5, kind: input, shape index: {}]
  %s6 = inlined_call_operand.vmem [shape: f32[8,8], index: 6, kind: input, shape index: {}]
  %s7 = inlined_call_operand.hbm [shape: f32[1,1], index: 7, kind: output, shape index: {}]
  %s8 = sld [smem:[#allocation0]]
  $region38: #{tpu_custom_call.1} parent=0
    _
  %s10 = ssub.s32 1, %s8
  %s11 = scalar_select 0, %s10, %s8
  $region1: #{tpu_custom_call.1} parent=0
    #allocation2 [shape = 'u8[512]{0}', space=vmem, size = 0x400, scoped, tag = 'output window, operand 0, single buffered']
    #allocation3 [shape = 's32[1]{0}', space=sflag, size = 0x4, scoped, tag = 'scoped memory for tpu_custom_call.1']
    %12 = vsyncpa [#allocation3], 0
    // Predicated region
    $region2: #{tpu_custom_call.1} parent=1 // pred_check
      _
    $region3: #{tpu_custom_call.1} parent=1 // pred_check_branch
      %14 = sbr.rel (0) target = $region5
    $region4: #{tpu_custom_call.1} parent=1 // pred_region
      _
    $region5: #{tpu_custom_call.1} parent=1 // pred_fallthru
      _
    // Predicated region
    $region6: #{tpu_custom_call.1} parent=1 // pred_check
      _
    $region7: #{tpu_custom_call.1} parent=1 // pred_check_branch
      %16 = sbr.rel (0) target = $region9
    $region8: #{tpu_custom_call.1} parent=1 // pred_region
      _
    $region9: #{tpu_custom_call.1} parent=1 // pred_fallthru
      _
    // Predicated region
    $region10: #{tpu_custom_call.1} parent=1 // pred_check
      _
    $region11: #{tpu_custom_call.1} parent=1 // pred_check_branch
      %18 = sbr.rel (0) target = $region13
    $region12: #{tpu_custom_call.1} parent=1 // pred_region
      _
    $region13: #{tpu_custom_call.1} parent=1 // pred_fallthru
      _
    // Predicated region
    $region14: #{tpu_custom_call.1} parent=1 // pred_check
      _
    $region15: #{tpu_custom_call.1} parent=1 // pred_check_branch
      %20 = sbr.rel (0) target = $region17
    $region16: #{tpu_custom_call.1} parent=1 // pred_region
      _
    $region17: #{tpu_custom_call.1} parent=1 // pred_fallthru
      _
    // Predicated region
    $region18: #{tpu_custom_call.1} parent=1 // pred_check
      _
    $region19: #{tpu_custom_call.1} parent=1 // pred_check_branch
      %22 = sbr.rel (0) target = $region21
    $region20: #{tpu_custom_call.1} parent=1 // pred_region
      _
    $region21: #{tpu_custom_call.1} parent=1 // pred_fallthru
      _
    // Predicated region
    $region22: #{tpu_custom_call.1} parent=1 // pred_check
      _
    $region23: #{tpu_custom_call.1} parent=1 // pred_check_branch
      %24 = sbr.rel (0) target = $region25
    $region24: #{tpu_custom_call.1} parent=1 // pred_region
      _
    $region25: #{tpu_custom_call.1} parent=1 // pred_fallthru
      _
    // Predicated region
    $region26: #{tpu_custom_call.1} parent=1 // pred_check
      _
    $region27: #{tpu_custom_call.1} parent=1 // pred_check_branch
      %26 = sbr.rel (0) target = $region29
    $region28: #{tpu_custom_call.1} parent=1 // pred_region
      _
    $region29: #{tpu_custom_call.1} parent=1 // pred_fallthru
      _
    %v27 = vld [vmem:[%s0] sm:$0xff]
    %v28 = vld [vmem:[%s1] sm:$0xff]
    %v29 = vmul.f32 %v27, %v27
    %vm30 = vcmask 261120
    %v31 = vsel %vm30, %v29, 0.0
    %32 = vadd.xlane.f32.xlu0 %v31
    %v33 = vpop.xlane.xlu0 %32
    %v34 = vmul.f32 %v28, %v28
    %v35 = vsel %vm30, %v34, 0.0
    %36 = vadd.xlane.f32.xlu0 %v35
    %v37 = vpop.xlane.xlu0 %36
    %38 = vxpose.xlu0.b32.start [1/16] %v33, 128
    %39 = vxpose.xlu0.b32.cont [2/16] 0.0, 128
    %40 = vxpose.xlu0.b32.cont [3/16] 0.0, 128
    %41 = vxpose.xlu0.b32.cont [4/16] 0.0, 128
    %42 = vxpose.xlu0.b32.cont [5/16] 0.0, 128
    %43 = vxpose.xlu0.b32.cont [6/16] 0.0, 128
    %44 = vxpose.xlu0.b32.cont [7/16] 0.0, 128
    %45 = vxpose.xlu0.b32.cont [8/16] 0.0, 128
    %46 = vxpose.xlu0.b32.cont [9/16] 0.0, 128
    %47 = vxpose.xlu0.b32.cont [10/16] 0.0, 128
    %48 = vxpose.xlu0.b32.cont [11/16] 0.0, 128
    %49 = vxpose.xlu0.b32.cont [12/16] 0.0, 128
    %50 = vxpose.xlu0.b32.cont [13/16] 0.0, 128
    %51 = vxpose.xlu0.b32.cont [14/16] 0.0, 128
    %52 = vxpose.xlu0.b32.cont [15/16] 0.0, 128
    %53 = vxpose.xlu0.b32.end [16/16] 0.0, 128
    %v54 = vpop.trf.xlu0
    %v55 = vpop.trf.xlu0
    %v56 = vpop.trf.xlu0
    %v57 = vpop.trf.xlu0
    %v58 = vpop.trf.xlu0
    %v59 = vpop.trf.xlu0
    %v60 = vpop.trf.xlu0
    %v61 = vpop.trf.xlu0
    %v62 = vpop.trf.xlu0
    %v63 = vpop.trf.xlu0
    %v64 = vpop.trf.xlu0
    %v65 = vpop.trf.xlu0
    %v66 = vpop.trf.xlu0
    %v67 = vpop.trf.xlu0
    %v68 = vpop.trf.xlu0
    %v69 = vpop.trf.xlu0
    %70 = vxpose.xlu0.b32.start [1/16] %v37, 128
    %71 = vxpose.xlu0.b32.cont [2/16] 0.0, 128
    %72 = vxpose.xlu0.b32.cont [3/16] 0.0, 128
    %73 = vxpose.xlu0.b32.cont [4/16] 0.0, 128
    %74 = vxpose.xlu0.b32.cont [5/16] 0.0, 128
    %75 = vxpose.xlu0.b32.cont [6/16] 0.0, 128
    %76 = vxpose.xlu0.b32.cont [7/16] 0.0, 128
    %77 = vxpose.xlu0.b32.cont [8/16] 0.0, 128
    %78 = vxpose.xlu0.b32.cont [9/16] 0.0, 128
    %79 = vxpose.xlu0.b32.cont [10/16] 0.0, 128
    %80 = vxpose.xlu0.b32.cont [11/16] 0.0, 128
    %81 = vxpose.xlu0.b32.cont [12/16] 0.0, 128
    %82 = vxpose.xlu0.b32.cont [13/16] 0.0, 128
    %83 = vxpose.xlu0.b32.cont [14/16] 0.0, 128
    %84 = vxpose.xlu0.b32.cont [15/16] 0.0, 128
    %85 = vxpose.xlu0.b32.end [16/16] 0.0, 128
    %v86 = vpop.trf.xlu0
    %v87 = vpop.trf.xlu0
    %v88 = vpop.trf.xlu0
    %v89 = vpop.trf.xlu0
    %v90 = vpop.trf.xlu0
    %v91 = vpop.trf.xlu0
    %v92 = vpop.trf.xlu0
    %v93 = vpop.trf.xlu0
    %v94 = vpop.trf.xlu0
    %v95 = vpop.trf.xlu0
    %v96 = vpop.trf.xlu0
    %v97 = vpop.trf.xlu0
    %v98 = vpop.trf.xlu0
    %v99 = vpop.trf.xlu0
    %v100 = vpop.trf.xlu0
    %v101 = vpop.trf.xlu0
    %v103 = vsel %vm30, %v27, 0
    %105 = vmatprep.subr.mxu0 0.0
    %106 = vmatpush1.xpose.msra.mxu0 %v103
    %107 = vmatprep.subr.mxu0 0.0
    %108 = vmatpush1.xpose.msra.mxu0 0.0
    %109 = vmatprep.subr.mxu0 0.0
    %110 = vmatpush1.xpose.msra.mxu0 0.0
    %111 = vmatprep.subr.mxu0 0.0
    %112 = vmatpush1.xpose.msra.mxu0 0.0
    %113 = vmatprep.subr.mxu0 0.0
    %114 = vmatpush1.xpose.msra.mxu0 0.0
    %115 = vmatprep.subr.mxu0 0.0
    %116 = vmatpush1.xpose.msra.mxu0 0.0
    %117 = vmatprep.subr.mxu0 0.0
    %118 = vmatpush1.xpose.msra.mxu0 0.0
    %119 = vmatprep.subr.mxu0 0.0
    %120 = vmatpush1.xpose.msra.mxu0 0.0
    %121 = vmatprep.subr.mxu0 0.0
    %122 = vmatpush1.xpose.msra.mxu0 0.0
    %123 = vmatprep.subr.mxu0 0.0
    %124 = vmatpush1.xpose.msra.mxu0 0.0
    %125 = vmatprep.subr.mxu0 0.0
    %126 = vmatpush1.xpose.msra.mxu0 0.0
    %127 = vmatprep.subr.mxu0 0.0
    %128 = vmatpush1.xpose.msra.mxu0 0.0
    %129 = vmatprep.subr.mxu0 0.0
    %130 = vmatpush1.xpose.msra.mxu0 0.0
    %131 = vmatprep.subr.mxu0 0.0
    %132 = vmatpush1.xpose.msra.mxu0 0.0
    %133 = vmatprep.subr.mxu0 0.0
    %134 = vmatpush1.xpose.msra.mxu0 0.0
    %135 = vmatprep.subr.mxu0 0.0
    %136 = vmatpush1.xpose.msra.mxu0 0.0
    %137 = vmatprep.subr.mxu0 0.0
    %138 = vmatpush1.xpose.msra.mxu0 0.0
    %139 = vmatprep.subr.mxu0 0.0
    %140 = vmatpush1.xpose.msra.mxu0 0.0
    %141 = vmatprep.subr.mxu0 0.0
    %142 = vmatpush1.xpose.msra.mxu0 0.0
    %143 = vmatprep.subr.mxu0 0.0
    %144 = vmatpush1.xpose.msra.mxu0 0.0
    %145 = vmatprep.subr.mxu0 0.0
    %146 = vmatpush1.xpose.msra.mxu0 0.0
    %147 = vmatprep.subr.mxu0 0.0
    %148 = vmatpush1.xpose.msra.mxu0 0.0
    %149 = vmatprep.subr.mxu0 0.0
    %150 = vmatpush1.xpose.msra.mxu0 0.0
    %151 = vmatprep.subr.mxu0 0.0
    %152 = vmatpush1.xpose.msra.mxu0 0.0
    %153 = vmatprep.subr.mxu0 0.0
    %154 = vmatpush1.xpose.msra.mxu0 0.0
    %155 = vmatprep.subr.mxu0 0.0
    %156 = vmatpush1.xpose.msra.mxu0 0.0
    %157 = vmatprep.subr.mxu0 0.0
    %158 = vmatpush1.xpose.msra.mxu0 0.0
    %159 = vmatprep.subr.mxu0 0.0
    %160 = vmatpush1.xpose.msra.mxu0 0.0
    %161 = vmatprep.subr.mxu0 0.0
    %162 = vmatpush1.xpose.msra.mxu0 0.0
    %163 = vmatprep.subr.mxu0 0.0
    %164 = vmatpush1.xpose.msra.mxu0 0.0
    %165 = vmatprep.subr.mxu0 0.0
    %166 = vmatpush1.xpose.msra.mxu0 0.0
    %167 = vmatprep.subr.mxu0 0.0
    %168 = vmatpush1.xpose.msra.mxu0 0.0
    %169 = vmatprep.mubr.f32.mxu0 0.0
    %170 = vmatmul.mubr.f32.gmra.mrb[0].mxu0 %v103
    %v171 = vpop.f32.mrb[0].mxu0
    %v172 = vadd.f32 0.0, %v171
    %v173 = vpop.f32.mrb[0].mxu0
    %174 = vdwg.mxu0
    %v176 = vsel %vm30, %v28, 0
    %178 = vmatprep.subr.mxu0 0.0
    %179 = vmatpush1.xpose.msra.mxu0 %v176
    %180 = vmatprep.subr.mxu0 0.0
    %181 = vmatpush1.xpose.msra.mxu0 0.0
    %182 = vmatprep.subr.mxu0 0.0
    %183 = vmatpush1.xpose.msra.mxu0 0.0
    %184 = vmatprep.subr.mxu0 0.0
    %185 = vmatpush1.xpose.msra.mxu0 0.0
    %186 = vmatprep.subr.mxu0 0.0
    %187 = vmatpush1.xpose.msra.mxu0 0.0
    %188 = vmatprep.subr.mxu0 0.0
    %189 = vmatpush1.xpose.msra.mxu0 0.0
    %190 = vmatprep.subr.mxu0 0.0
    %191 = vmatpush1.xpose.msra.mxu0 0.0
    %192 = vmatprep.subr.mxu0 0.0
    %193 = vmatpush1.xpose.msra.mxu0 0.0
    %194 = vmatprep.subr.mxu0 0.0
    %195 = vmatpush1.xpose.msra.mxu0 0.0
    %196 = vmatprep.subr.mxu0 0.0
    %197 = vmatpush1.xpose.msra.mxu0 0.0
    %198 = vmatprep.subr.mxu0 0.0
    %199 = vmatpush1.xpose.msra.mxu0 0.0
    %200 = vmatprep.subr.mxu0 0.0
    %201 = vmatpush1.xpose.msra.mxu0 0.0
    %202 = vmatprep.subr.mxu0 0.0
    %203 = vmatpush1.xpose.msra.mxu0 0.0
    %204 = vmatprep.subr.mxu0 0.0
    %205 = vmatpush1.xpose.msra.mxu0 0.0
    %206 = vmatprep.subr.mxu0 0.0
    %207 = vmatpush1.xpose.msra.mxu0 0.0
    %208 = vmatprep.subr.mxu0 0.0
    %209 = vmatpush1.xpose.msra.mxu0 0.0
    %210 = vmatprep.subr.mxu0 0.0
    %211 = vmatpush1.xpose.msra.mxu0 0.0
    %212 = vmatprep.subr.mxu0 0.0
    %213 = vmatpush1.xpose.msra.mxu0 0.0
    %214 = vmatprep.subr.mxu0 0.0
    %215 = vmatpush1.xpose.msra.mxu0 0.0
    %216 = vmatprep.subr.mxu0 0.0
    %217 = vmatpush1.xpose.msra.mxu0 0.0
    %218 = vmatprep.subr.mxu0 0.0
    %219 = vmatpush1.xpose.msra.mxu0 0.0
    %220 = vmatprep.subr.mxu0 0.0
    %221 = vmatpush1.xpose.msra.mxu0 0.0
    %222 = vmatprep.subr.mxu0 0.0
    %223 = vmatpush1.xpose.msra.mxu0 0.0
    %224 = vmatprep.subr.mxu0 0.0
    %225 = vmatpush1.xpose.msra.mxu0 0.0
    %226 = vmatprep.subr.mxu0 0.0
    %227 = vmatpush1.xpose.msra.mxu0 0.0
    %228 = vmatprep.subr.mxu0 0.0
    %229 = vmatpush1.xpose.msra.mxu0 0.0
    %230 = vmatprep.subr.mxu0 0.0
    %231 = vmatpush1.xpose.msra.mxu0 0.0
    %232 = vmatprep.subr.mxu0 0.0
    %233 = vmatpush1.xpose.msra.mxu0 0.0
    %234 = vmatprep.subr.mxu0 0.0
    %235 = vmatpush1.xpose.msra.mxu0 0.0
    %236 = vmatprep.subr.mxu0 0.0
    %237 = vmatpush1.xpose.msra.mxu0 0.0
    %238 = vmatprep.subr.mxu0 0.0
    %239 = vmatpush1.xpose.msra.mxu0 0.0
    %240 = vmatprep.subr.mxu0 0.0
    %241 = vmatpush1.xpose.msra.mxu0 0.0
    %242 = vmatprep.mubr.f32.mxu0 0.0
    %243 = vmatmul.mubr.f32.gmra.mrb[0].mxu0 %v103
    %v244 = vpop.f32.mrb[0].mxu0
    %v245 = vadd.f32 0.0, %v244
    %v246 = vpop.f32.mrb[0].mxu0
    %247 = vdwg.mxu0
    %248 = vmatprep.subr.mxu0 0.0
    %249 = vmatpush1.xpose.msra.mxu0 %v176
    %250 = vmatprep.subr.mxu0 0.0
    %251 = vmatpush1.xpose.msra.mxu0 0.0
    %252 = vmatprep.subr.mxu0 0.0
    %253 = vmatpush1.xpose.msra.mxu0 0.0
    %254 = vmatprep.subr.mxu0 0.0
    %255 = vmatpush1.xpose.msra.mxu0 0.0
    %256 = vmatprep.subr.mxu0 0.0
    %257 = vmatpush1.xpose.msra.mxu0 0.0
    %258 = vmatprep.subr.mxu0 0.0
    %259 = vmatpush1.xpose.msra.mxu0 0.0
    %260 = vmatprep.subr.mxu0 0.0
    %261 = vmatpush1.xpose.msra.mxu0 0.0
    %262 = vmatprep.subr.mxu0 0.0
    %263 = vmatpush1.xpose.msra.mxu0 0.0
    %264 = vmatprep.subr.mxu0 0.0
    %265 = vmatpush1.xpose.msra.mxu0 0.0
    %266 = vmatprep.subr.mxu0 0.0
    %267 = vmatpush1.xpose.msra.mxu0 0.0
    %268 = vmatprep.subr.mxu0 0.0
    %269 = vmatpush1.xpose.msra.mxu0 0.0
    %270 = vmatprep.subr.mxu0 0.0
    %271 = vmatpush1.xpose.msra.mxu0 0.0
    %272 = vmatprep.subr.mxu0 0.0
    %273 = vmatpush1.xpose.msra.mxu0 0.0
    %274 = vmatprep.subr.mxu0 0.0
    %275 = vmatpush1.xpose.msra.mxu0 0.0
    %276 = vmatprep.subr.mxu0 0.0
    %277 = vmatpush1.xpose.msra.mxu0 0.0
    %278 = vmatprep.subr.mxu0 0.0
    %279 = vmatpush1.xpose.msra.mxu0 0.0
    %280 = vmatprep.subr.mxu0 0.0
    %281 = vmatpush1.xpose.msra.mxu0 0.0
    %282 = vmatprep.subr.mxu0 0.0
    %283 = vmatpush1.xpose.msra.mxu0 0.0
    %284 = vmatprep.subr.mxu0 0.0
    %285 = vmatpush1.xpose.msra.mxu0 0.0
    %286 = vmatprep.subr.mxu0 0.0
    %287 = vmatpush1.xpose.msra.mxu0 0.0
    %288 = vmatprep.subr.mxu0 0.0
    %289 = vmatpush1.xpose.msra.mxu0 0.0
    %290 = vmatprep.subr.mxu0 0.0
    %291 = vmatpush1.xpose.msra.mxu0 0.0
    %292 = vmatprep.subr.mxu0 0.0
    %293 = vmatpush1.xpose.msra.mxu0 0.0
    %294 = vmatprep.subr.mxu0 0.0
    %295 = vmatpush1.xpose.msra.mxu0 0.0
    %296 = vmatprep.subr.mxu0 0.0
    %297 = vmatpush1.xpose.msra.mxu0 0.0
    %298 = vmatprep.subr.mxu0 0.0
    %299 = vmatpush1.xpose.msra.mxu0 0.0
    %300 = vmatprep.subr.mxu0 0.0
    %301 = vmatpush1.xpose.msra.mxu0 0.0
    %302 = vmatprep.subr.mxu0 0.0
    %303 = vmatpush1.xpose.msra.mxu0 0.0
    %304 = vmatprep.subr.mxu0 0.0
    %305 = vmatpush1.xpose.msra.mxu0 0.0
    %306 = vmatprep.subr.mxu0 0.0
    %307 = vmatpush1.xpose.msra.mxu0 0.0
    %308 = vmatprep.subr.mxu0 0.0
    %309 = vmatpush1.xpose.msra.mxu0 0.0
    %310 = vmatprep.subr.mxu0 0.0
    %311 = vmatpush1.xpose.msra.mxu0 0.0
    %312 = vmatprep.mubr.f32.mxu0 0.0
    %313 = vmatmul.mubr.f32.gmra.mrb[0].mxu0 %v176
    %v314 = vpop.f32.mrb[0].mxu0
    %v315 = vadd.f32 0.0, %v314
    %v316 = vpop.f32.mrb[0].mxu0
    %317 = vdwg.mxu0
    %v318 = vlaneseq
    %v319 = vshrl.u32 %v318, 7
    %v320 = vsub.s32 0, %v319
    %v321 = vrot.slane %v54, %v320
    %v322 = vadd.f32 %v33, %v321
    %v323 = vmul.f32 %v172, 2.0
    %v324 = vsub.f32 %v322, %v323
    %v325 = vmax.f32 %v324, 0.0
    %v326 = vlaneseq
    %v327 = vshrl.u32 %v326, 7
    %v328 = vsub.s32 0, %v327
    %v329 = vrot.slane %v86, %v328
    %v330 = vadd.f32 %v33, %v329
    %v331 = vmul.f32 %v245, 2.0
    %v332 = vsub.f32 %v330, %v331
    %v333 = vmax.f32 %v332, 0.0
    %v334 = vadd.f32 %v37, %v329
    %v335 = vmul.f32 %v315, 2.0
    %v336 = vsub.f32 %v334, %v335
    %v337 = vmax.f32 %v336, 0.0
    %vm338 = vcmask 64512
    %v339 = vsel %vm338, %v325, 0.0
    %340 = vadd.xlane.f32.xlu0 %v339
    %v341 = vpop.xlane.xlu0 %340
    %v342 = vrot.slane %v341, 4
    %v343 = vadd.f32 %v341, %v342
    %v344 = vrot.slane %v343, 2
    %v345 = vadd.f32 %v343, %v344
    %v346 = vrot.slane %v345, 1
    %v347 = vadd.f32 %v345, %v346
    %v348 = vsel %vm338, %v337, 0.0
    %349 = vadd.xlane.f32.xlu0 %v348
    %v350 = vpop.xlane.xlu0 %349
    %v351 = vrot.slane %v350, 4
    %v352 = vadd.f32 %v350, %v351
    %v353 = vrot.slane %v352, 2
    %v354 = vadd.f32 %v352, %v353
    %v355 = vrot.slane %v354, 1
    %v356 = vadd.f32 %v354, %v355
    %v357 = vadd.f32 %v347, %v356
    %v358 = vsel %vm338, %v333, 0.0
    %359 = vadd.xlane.f32.xlu0 %v358
    %v360 = vpop.xlane.xlu0 %359
    %v361 = vrot.slane %v360, 4
    %v362 = vadd.f32 %v360, %v361
    %v363 = vrot.slane %v362, 2
    %v364 = vadd.f32 %v362, %v363
    %v365 = vrot.slane %v364, 1
    %v366 = vadd.f32 %v364, %v365
    %v367 = vmul.f32 %v366, 2.0
    %v368 = vadd.f32 %v357, %v367
    %v369 = vmul.f32 %v368, 0.00390625
    %v370 = vmax.f32 %v369, 1e-12
    %v371 = vrcp.pop %v370
    %v372 = vmul.f32 -1.0, %v371
    %v373 = vmul.f32 %v325, %v372
    %v374 = vmul.f32 %v373, 1.442695
    %v375 = vpow.pop %v374
    %v376 = vmul.f32 %v333, %v372
    %v377 = vmul.f32 %v376, 1.442695
    %v378 = vpow.pop %v377
    %v379 = vmul.f32 %v337, %v372
    %v380 = vmul.f32 %v379, 1.442695
    %v381 = vpow.pop %v380
    %v382 = vmul.f32 -0.5, %v371
    %v383 = vmul.f32 %v325, %v382
    %v384 = vmul.f32 %v383, 1.442695
    %v385 = vpow.pop %v384
    %v386 = vmul.f32 %v333, %v382
    %v387 = vmul.f32 %v386, 1.442695
    %v388 = vpow.pop %v387
    %v389 = vmul.f32 %v337, %v382
    %v390 = vmul.f32 %v389, 1.442695
    %v391 = vpow.pop %v390
    %v392 = vadd.f32 %v375, %v385
    %v393 = vadd.f32 %v378, %v388
    %v394 = vadd.f32 %v381, %v391
    %v395 = vmul.f32 -0.25, %v371
    %v396 = vmul.f32 %v325, %v395
    %v397 = vmul.f32 %v396, 1.442695
    %v398 = vpow.pop %v397
    %v399 = vmul.f32 %v333, %v395
    %v400 = vmul.f32 %v399, 1.442695
    %v401 = vpow.pop %v400
    %v402 = vmul.f32 %v337, %v395
    %v403 = vmul.f32 %v402, 1.442695
    %v404 = vpow.pop %v403
    %v405 = vadd.f32 %v392, %v398
    %v406 = vadd.f32 %v393, %v401
    %v407 = vadd.f32 %v394, %v404
    %v408 = vld [vmem:[%s2] sm:$0xff]
    %v409 = vld [vmem:[%s3] sm:$0xff]
    %v410 = vmul.f32 %v408, %v408
    %vm411 = vcmask 31744
    %v412 = vsel %vm411, %v410, 0.0
    %413 = vadd.xlane.f32.xlu0 %v412
    %v414 = vpop.xlane.xlu0 %413
    %v415 = vmul.f32 %v409, %v409
    %v416 = vsel %vm411, %v415, 0.0
    %417 = vadd.xlane.f32.xlu0 %v416
    %v418 = vpop.xlane.xlu0 %417
    %419 = vxpose.xlu0.b32.start [1/16] %v414, 128
    %420 = vxpose.xlu0.b32.cont [2/16] 0.0, 128
    %421 = vxpose.xlu0.b32.cont [3/16] 0.0, 128
    %422 = vxpose.xlu0.b32.cont [4/16] 0.0, 128
    %423 = vxpose.xlu0.b32.cont [5/16] 0.0, 128
    %424 = vxpose.xlu0.b32.cont [6/16] 0.0, 128
    %425 = vxpose.xlu0.b32.cont [7/16] 0.0, 128
    %426 = vxpose.xlu0.b32.cont [8/16] 0.0, 128
    %427 = vxpose.xlu0.b32.cont [9/16] 0.0, 128
    %428 = vxpose.xlu0.b32.cont [10/16] 0.0, 128
    %429 = vxpose.xlu0.b32.cont [11/16] 0.0, 128
    %430 = vxpose.xlu0.b32.cont [12/16] 0.0, 128
    %431 = vxpose.xlu0.b32.cont [13/16] 0.0, 128
    %432 = vxpose.xlu0.b32.cont [14/16] 0.0, 128
    %433 = vxpose.xlu0.b32.cont [15/16] 0.0, 128
    %434 = vxpose.xlu0.b32.end [16/16] 0.0, 128
    %v435 = vpop.trf.xlu0
    %v436 = vpop.trf.xlu0
    %v437 = vpop.trf.xlu0
    %v438 = vpop.trf.xlu0
    %v439 = vpop.trf.xlu0
    %v440 = vpop.trf.xlu0
    %v441 = vpop.trf.xlu0
    %v442 = vpop.trf.xlu0
    %v443 = vpop.trf.xlu0
    %v444 = vpop.trf.xlu0
    %v445 = vpop.trf.xlu0
    %v446 = vpop.trf.xlu0
    %v447 = vpop.trf.xlu0
    %v448 = vpop.trf.xlu0
    %v449 = vpop.trf.xlu0
    %v450 = vpop.trf.xlu0
    %451 = vxpose.xlu0.b32.start [1/16] %v418, 128
    %452 = vxpose.xlu0.b32.cont [2/16] 0.0, 128
    %453 = vxpose.xlu0.b32.cont [3/16] 0.0, 128
    %454 = vxpose.xlu0.b32.cont [4/16] 0.0, 128
    %455 = vxpose.xlu0.b32.cont [5/16] 0.0, 128
    %456 = vxpose.xlu0.b32.cont [6/16] 0.0, 128
    %457 = vxpose.xlu0.b32.cont [7/16] 0.0, 128
    %458 = vxpose.xlu0.b32.cont [8/16] 0.0, 128
    %459 = vxpose.xlu0.b32.cont [9/16] 0.0, 128
    %460 = vxpose.xlu0.b32.cont [10/16] 0.0, 128
    %461 = vxpose.xlu0.b32.cont [11/16] 0.0, 128
    %462 = vxpose.xlu0.b32.cont [12/16] 0.0, 128
    %463 = vxpose.xlu0.b32.cont [13/16] 0.0, 128
    %464 = vxpose.xlu0.b32.cont [14/16] 0.0, 128
    %465 = vxpose.xlu0.b32.cont [15/16] 0.0, 128
    %466 = vxpose.xlu0.b32.end [16/16] 0.0, 128
    %v467 = vpop.trf.xlu0
    %v468 = vpop.trf.xlu0
    %v469 = vpop.trf.xlu0
    %v470 = vpop.trf.xlu0
    %v471 = vpop.trf.xlu0
    %v472 = vpop.trf.xlu0
    %v473 = vpop.trf.xlu0
    %v474 = vpop.trf.xlu0
    %v475 = vpop.trf.xlu0
    %v476 = vpop.trf.xlu0
    %v477 = vpop.trf.xlu0
    %v478 = vpop.trf.xlu0
    %v479 = vpop.trf.xlu0
    %v480 = vpop.trf.xlu0
    %v481 = vpop.trf.xlu0
    %v482 = vpop.trf.xlu0
    %v484 = vsel %vm411, %v408, 0
    %486 = vmatprep.subr.mxu0 0.0
    %487 = vmatpush1.xpose.msra.mxu0 %v484
    %488 = vmatprep.subr.mxu0 0.0
    %489 = vmatpush1.xpose.msra.mxu0 0.0
    %490 = vmatprep.subr.mxu0 0.0
    %491 = vmatpush1.xpose.msra.mxu0 0.0
    %492 = vmatprep.subr.mxu0 0.0
    %493 = vmatpush1.xpose.msra.mxu0 0.0
    %494 = vmatprep.subr.mxu0 0.0
    %495 = vmatpush1.xpose.msra.mxu0 0.0
    %496 = vmatprep.subr.mxu0 0.0
    %497 = vmatpush1.xpose.msra.mxu0 0.0
    %498 = vmatprep.subr.mxu0 0.0
    %499 = vmatpush1.xpose.msra.mxu0 0.0
    %500 = vmatprep.subr.mxu0 0.0
    %501 = vmatpush1.xpose.msra.mxu0 0.0
    %502 = vmatprep.subr.mxu0 0.0
    %503 = vmatpush1.xpose.msra.mxu0 0.0
    %504 = vmatprep.subr.mxu0 0.0
    %505 = vmatpush1.xpose.msra.mxu0 0.0
    %506 = vmatprep.subr.mxu0 0.0
    %507 = vmatpush1.xpose.msra.mxu0 0.0
    %508 = vmatprep.subr.mxu0 0.0
    %509 = vmatpush1.xpose.msra.mxu0 0.0
    %510 = vmatprep.subr.mxu0 0.0
    %511 = vmatpush1.xpose.msra.mxu0 0.0
    %512 = vmatprep.subr.mxu0 0.0
    %513 = vmatpush1.xpose.msra.mxu0 0.0
    %514 = vmatprep.subr.mxu0 0.0
    %515 = vmatpush1.xpose.msra.mxu0 0.0
    %516 = vmatprep.subr.mxu0 0.0
    %517 = vmatpush1.xpose.msra.mxu0 0.0
    %518 = vmatprep.subr.mxu0 0.0
    %519 = vmatpush1.xpose.msra.mxu0 0.0
    %520 = vmatprep.subr.mxu0 0.0
    %521 = vmatpush1.xpose.msra.mxu0 0.0
    %522 = vmatprep.subr.mxu0 0.0
    %523 = vmatpush1.xpose.msra.mxu0 0.0
    %524 = vmatprep.subr.mxu0 0.0
    %525 = vmatpush1.xpose.msra.mxu0 0.0
    %526 = vmatprep.subr.mxu0 0.0
    %527 = vmatpush1.xpose.msra.mxu0 0.0
    %528 = vmatprep.subr.mxu0 0.0
    %529 = vmatpush1.xpose.msra.mxu0 0.0
    %530 = vmatprep.subr.mxu0 0.0
    %531 = vmatpush1.xpose.msra.mxu0 0.0
    %532 = vmatprep.subr.mxu0 0.0
    %533 = vmatpush1.xpose.msra.mxu0 0.0
    %534 = vmatprep.subr.mxu0 0.0
    %535 = vmatpush1.xpose.msra.mxu0 0.0
    %536 = vmatprep.subr.mxu0 0.0
    %537 = vmatpush1.xpose.msra.mxu0 0.0
    %538 = vmatprep.subr.mxu0 0.0
    %539 = vmatpush1.xpose.msra.mxu0 0.0
    %540 = vmatprep.subr.mxu0 0.0
    %541 = vmatpush1.xpose.msra.mxu0 0.0
    %542 = vmatprep.subr.mxu0 0.0
    %543 = vmatpush1.xpose.msra.mxu0 0.0
    %544 = vmatprep.subr.mxu0 0.0
    %545 = vmatpush1.xpose.msra.mxu0 0.0
    %546 = vmatprep.subr.mxu0 0.0
    %547 = vmatpush1.xpose.msra.mxu0 0.0
    %548 = vmatprep.subr.mxu0 0.0
    %549 = vmatpush1.xpose.msra.mxu0 0.0
    %550 = vmatprep.mubr.f32.mxu0 0.0
    %551 = vmatmul.mubr.f32.gmra.mrb[0].mxu0 %v484
    %v552 = vpop.f32.mrb[0].mxu0
    %v553 = vadd.f32 0.0, %v552
    %v554 = vpop.f32.mrb[0].mxu0
    %555 = vdwg.mxu0
    %v557 = vsel %vm411, %v409, 0
    %559 = vmatprep.subr.mxu0 0.0
    %560 = vmatpush1.xpose.msra.mxu0 %v557
    %561 = vmatprep.subr.mxu0 0.0
    %562 = vmatpush1.xpose.msra.mxu0 0.0
    %563 = vmatprep.subr.mxu0 0.0
    %564 = vmatpush1.xpose.msra.mxu0 0.0
    %565 = vmatprep.subr.mxu0 0.0
    %566 = vmatpush1.xpose.msra.mxu0 0.0
    %567 = vmatprep.subr.mxu0 0.0
    %568 = vmatpush1.xpose.msra.mxu0 0.0
    %569 = vmatprep.subr.mxu0 0.0
    %570 = vmatpush1.xpose.msra.mxu0 0.0
    %571 = vmatprep.subr.mxu0 0.0
    %572 = vmatpush1.xpose.msra.mxu0 0.0
    %573 = vmatprep.subr.mxu0 0.0
    %574 = vmatpush1.xpose.msra.mxu0 0.0
    %575 = vmatprep.subr.mxu0 0.0
    %576 = vmatpush1.xpose.msra.mxu0 0.0
    %577 = vmatprep.subr.mxu0 0.0
    %578 = vmatpush1.xpose.msra.mxu0 0.0
    %579 = vmatprep.subr.mxu0 0.0
    %580 = vmatpush1.xpose.msra.mxu0 0.0
    %581 = vmatprep.subr.mxu0 0.0
    %582 = vmatpush1.xpose.msra.mxu0 0.0
    %583 = vmatprep.subr.mxu0 0.0
    %584 = vmatpush1.xpose.msra.mxu0 0.0
    %585 = vmatprep.subr.mxu0 0.0
    %586 = vmatpush1.xpose.msra.mxu0 0.0
    %587 = vmatprep.subr.mxu0 0.0
    %588 = vmatpush1.xpose.msra.mxu0 0.0
    %589 = vmatprep.subr.mxu0 0.0
    %590 = vmatpush1.xpose.msra.mxu0 0.0
    %591 = vmatprep.subr.mxu0 0.0
    %592 = vmatpush1.xpose.msra.mxu0 0.0
    %593 = vmatprep.subr.mxu0 0.0
    %594 = vmatpush1.xpose.msra.mxu0 0.0
    %595 = vmatprep.subr.mxu0 0.0
    %596 = vmatpush1.xpose.msra.mxu0 0.0
    %597 = vmatprep.subr.mxu0 0.0
    %598 = vmatpush1.xpose.msra.mxu0 0.0
    %599 = vmatprep.subr.mxu0 0.0
    %600 = vmatpush1.xpose.msra.mxu0 0.0
    %601 = vmatprep.subr.mxu0 0.0
    %602 = vmatpush1.xpose.msra.mxu0 0.0
    %603 = vmatprep.subr.mxu0 0.0
    %604 = vmatpush1.xpose.msra.mxu0 0.0
    %605 = vmatprep.subr.mxu0 0.0
    %606 = vmatpush1.xpose.msra.mxu0 0.0
    %607 = vmatprep.subr.mxu0 0.0
    %608 = vmatpush1.xpose.msra.mxu0 0.0
    %609 = vmatprep.subr.mxu0 0.0
    %610 = vmatpush1.xpose.msra.mxu0 0.0
    %611 = vmatprep.subr.mxu0 0.0
    %612 = vmatpush1.xpose.msra.mxu0 0.0
    %613 = vmatprep.subr.mxu0 0.0
    %614 = vmatpush1.xpose.msra.mxu0 0.0
    %615 = vmatprep.subr.mxu0 0.0
    %616 = vmatpush1.xpose.msra.mxu0 0.0
    %617 = vmatprep.subr.mxu0 0.0
    %618 = vmatpush1.xpose.msra.mxu0 0.0
    %619 = vmatprep.subr.mxu0 0.0
    %620 = vmatpush1.xpose.msra.mxu0 0.0
    %621 = vmatprep.subr.mxu0 0.0
    %622 = vmatpush1.xpose.msra.mxu0 0.0
    %623 = vmatprep.mubr.f32.mxu0 0.0
    %624 = vmatmul.mubr.f32.gmra.mrb[0].mxu0 %v484
    %v625 = vpop.f32.mrb[0].mxu0
    %v626 = vadd.f32 0.0, %v625
    %v627 = vpop.f32.mrb[0].mxu0
    %628 = vdwg.mxu0
    %629 = vmatprep.subr.mxu0 0.0
    %630 = vmatpush1.xpose.msra.mxu0 %v557
    %631 = vmatprep.subr.mxu0 0.0
    %632 = vmatpush1.xpose.msra.mxu0 0.0
    %633 = vmatprep.subr.mxu0 0.0
    %634 = vmatpush1.xpose.msra.mxu0 0.0
    %635 = vmatprep.subr.mxu0 0.0
    %636 = vmatpush1.xpose.msra.mxu0 0.0
    %637 = vmatprep.subr.mxu0 0.0
    %638 = vmatpush1.xpose.msra.mxu0 0.0
    %639 = vmatprep.subr.mxu0 0.0
    %640 = vmatpush1.xpose.msra.mxu0 0.0
    %641 = vmatprep.subr.mxu0 0.0
    %642 = vmatpush1.xpose.msra.mxu0 0.0
    %643 = vmatprep.subr.mxu0 0.0
    %644 = vmatpush1.xpose.msra.mxu0 0.0
    %645 = vmatprep.subr.mxu0 0.0
    %646 = vmatpush1.xpose.msra.mxu0 0.0
    %647 = vmatprep.subr.mxu0 0.0
    %648 = vmatpush1.xpose.msra.mxu0 0.0
    %649 = vmatprep.subr.mxu0 0.0
    %650 = vmatpush1.xpose.msra.mxu0 0.0
    %651 = vmatprep.subr.mxu0 0.0
    %652 = vmatpush1.xpose.msra.mxu0 0.0
    %653 = vmatprep.subr.mxu0 0.0
    %654 = vmatpush1.xpose.msra.mxu0 0.0
    %655 = vmatprep.subr.mxu0 0.0
    %656 = vmatpush1.xpose.msra.mxu0 0.0
    %657 = vmatprep.subr.mxu0 0.0
    %658 = vmatpush1.xpose.msra.mxu0 0.0
    %659 = vmatprep.subr.mxu0 0.0
    %660 = vmatpush1.xpose.msra.mxu0 0.0
    %661 = vmatprep.subr.mxu0 0.0
    %662 = vmatpush1.xpose.msra.mxu0 0.0
    %663 = vmatprep.subr.mxu0 0.0
    %664 = vmatpush1.xpose.msra.mxu0 0.0
    %665 = vmatprep.subr.mxu0 0.0
    %666 = vmatpush1.xpose.msra.mxu0 0.0
    %667 = vmatprep.subr.mxu0 0.0
    %668 = vmatpush1.xpose.msra.mxu0 0.0
    %669 = vmatprep.subr.mxu0 0.0
    %670 = vmatpush1.xpose.msra.mxu0 0.0
    %671 = vmatprep.subr.mxu0 0.0
    %672 = vmatpush1.xpose.msra.mxu0 0.0
    %673 = vmatprep.subr.mxu0 0.0
    %674 = vmatpush1.xpose.msra.mxu0 0.0
    %675 = vmatprep.subr.mxu0 0.0
    %676 = vmatpush1.xpose.msra.mxu0 0.0
    %677 = vmatprep.subr.mxu0 0.0
    %678 = vmatpush1.xpose.msra.mxu0 0.0
    %679 = vmatprep.subr.mxu0 0.0
    %680 = vmatpush1.xpose.msra.mxu0 0.0
    %681 = vmatprep.subr.mxu0 0.0
    %682 = vmatpush1.xpose.msra.mxu0 0.0
    %683 = vmatprep.subr.mxu0 0.0
    %684 = vmatpush1.xpose.msra.mxu0 0.0
    %685 = vmatprep.subr.mxu0 0.0
    %686 = vmatpush1.xpose.msra.mxu0 0.0
    %687 = vmatprep.subr.mxu0 0.0
    %688 = vmatpush1.xpose.msra.mxu0 0.0
    %689 = vmatprep.subr.mxu0 0.0
    %690 = vmatpush1.xpose.msra.mxu0 0.0
    %691 = vmatprep.subr.mxu0 0.0
    %692 = vmatpush1.xpose.msra.mxu0 0.0
    %693 = vmatprep.mubr.f32.mxu0 0.0
    %694 = vmatmul.mubr.f32.gmra.mrb[0].mxu0 %v557
    %v695 = vpop.f32.mrb[0].mxu0
    %v696 = vadd.f32 0.0, %v695
    %v697 = vpop.f32.mrb[0].mxu0
    %698 = vdwg.mxu0
    %v699 = vlaneseq
    %v700 = vshrl.u32 %v699, 7
    %v701 = vsub.s32 0, %v700
    %v702 = vrot.slane %v435, %v701
    %v703 = vadd.f32 %v414, %v702
    %v704 = vmul.f32 %v553, 2.0
    %v705 = vsub.f32 %v703, %v704
    %v706 = vmax.f32 %v705, 0.0
    %v707 = vlaneseq
    %v708 = vshrl.u32 %v707, 7
    %v709 = vsub.s32 0, %v708
    %v710 = vrot.slane %v467, %v709
    %v711 = vadd.f32 %v414, %v710
    %v712 = vmul.f32 %v626, 2.0
    %v713 = vsub.f32 %v711, %v712
    %v714 = vmax.f32 %v713, 0.0
    %v715 = vadd.f32 %v418, %v710
    %v716 = vmul.f32 %v696, 2.0
    %v717 = vsub.f32 %v715, %v716
    %v718 = vmax.f32 %v717, 0.0
    %v719 = vmul.f32 %v706, -0.5907372
    %v720 = vmul.f32 %v719, 1.442695
    %v721 = vpow.pop %v720
    %v722 = vmul.f32 %v714, -0.5907372
    %v723 = vmul.f32 %v722, 1.442695
    %v724 = vpow.pop %v723
    %v725 = vmul.f32 %v718, -0.5907372
    %v726 = vmul.f32 %v725, 1.442695
    %v727 = vpow.pop %v726
    %v728 = vmul.f32 %v405, %v721
    %v729 = vmul.f32 %v406, %v724
    %v730 = vmul.f32 %v407, %v727
    %v731 = vld [vmem:[%s4] sm:$0xff]
    %v732 = vmul.f32 %v728, %v731
    %v733 = vsel %vm338, %v732, 0.0
    %734 = vadd.xlane.f32.xlu0 %v733
    %v735 = vpop.xlane.xlu0 %734
    %v736 = vrot.slane %v735, 4
    %v737 = vadd.f32 %v735, %v736
    %v738 = vrot.slane %v737, 2
    %v739 = vadd.f32 %v737, %v738
    %v740 = vrot.slane %v739, 1
    %v741 = vadd.f32 %v739, %v740
    %v742 = vld [vmem:[%s5] sm:$0xff]
    %v743 = vmul.f32 %v730, %v742
    %v744 = vsel %vm338, %v743, 0.0
    %745 = vadd.xlane.f32.xlu0 %v744
    %v746 = vpop.xlane.xlu0 %745
    %v747 = vrot.slane %v746, 4
    %v748 = vadd.f32 %v746, %v747
    %v749 = vrot.slane %v748, 2
    %v750 = vadd.f32 %v748, %v749
    %v751 = vrot.slane %v750, 1
    %v752 = vadd.f32 %v750, %v751
    %v753 = vadd.f32 %v741, %v752
    %v754 = vld [vmem:[%s6] sm:$0xff]
    %v755 = vmul.f32 %v729, %v754
    %v756 = vsel %vm338, %v755, 0.0
    %757 = vadd.xlane.f32.xlu0 %v756
    %v758 = vpop.xlane.xlu0 %757
    %v759 = vrot.slane %v758, 4
    %v760 = vadd.f32 %v758, %v759
    %v761 = vrot.slane %v760, 2
    %v762 = vadd.f32 %v760, %v761
    %v763 = vrot.slane %v762, 1
    %v764 = vadd.f32 %v762, %v763
    %v765 = vadd.f32 %v753, %v764
    %v766 = vadd.f32 %v765, 0.2857143
    %vm767 = vcmask 0
    %768 = vst.msk [vmem:[#allocation2] sm:$0x1] %vm767, %v766
    // Predicated region
    $region30: #{tpu_custom_call.1} parent=1 // pred_check
      _
    $region31: #{tpu_custom_call.1} parent=1 // pred_check_branch
      %770 = sbr.rel (0) target = $region33
    $region32: #{tpu_custom_call.1} parent=1 // pred_region
      %s772 = ssub.s32 16, 16
      %773 = vsyncadd [#allocation3], %s772
      %s775 = sshll.u32 [#allocation2], 4
      %s776 = int_to_ptr.vmem [resolvable:$true] %s775
      %778 = dma.vmem_to_hbm [thread:$0]  %s776, 16, %s7, [#allocation3]
    $region33: #{tpu_custom_call.1} parent=1 // pred_fallthru
      _
    // Predicated region
    $region34: #{tpu_custom_call.1} parent=1 // pred_check
      _
    $region35: #{tpu_custom_call.1} parent=1 // pred_check_branch
      %780 = sbr.rel (0) target = $region37
    $region36: #{tpu_custom_call.1} parent=1 // pred_region
      %781 = dma.done [#allocation3], 16
    $region37: #{tpu_custom_call.1} parent=1 // pred_fallthru
      _
    %782 = vsyncpa [#allocation3], 1

</llo_original>
